<compile_context>
chip_gen: v7x
topology: tpu7x:2x2x1
jax: 0.10.0
libtpu: 0.0.40
codegen_flags: <defaults>
</compile_context>

<pallas_src>
import functools
import math

import jax
import jax.numpy as jnp
from jax.experimental import pallas as pl
from jax.experimental.pallas import tpu as pltpu


def _round_up(x: int, m: int) -> int:
    return ((x + m - 1) // m) * m


def attn_kernel(x_q_ref, x_kv_ref, w_ref, o_ref, *, seq_len, d_out, dp, seq_pad):
    """One query tile of single-head self-attention.

    x_q_ref : (tq, d_in)        query-tile rows of x
    x_kv_ref: (seq_pad, d_in)   full (padded) x, pinned across grid steps
    w_ref   : (d_in, 3*dp)      fused, lane-padded [Wq | Wk | Wv]
    o_ref   : (tq, dp)          lane-dense (padded) output tile
    """
    xq = x_q_ref[...]
    xkv = x_kv_ref[...]

    # Projections (padded weight columns are zero, so values match the unpadded math).
    q = jnp.dot(xq, w_ref[:, :dp], preferred_element_type=jnp.float32)        # (tq, dp)
    kv = jnp.dot(xkv, w_ref[:, dp:], preferred_element_type=jnp.float32)      # (S_P, 2*dp)
    k = kv[:, :dp]
    v = kv[:, dp:]

    # scores = q @ k.T, contracted on the K side (no materialized transpose).
    s = jax.lax.dot_general(
        q, k,
        dimension_numbers=(((1,), (1,)), ((), ())),
        preferred_element_type=jnp.float32,
    )                                                                          # (tq, S_P)

    # Scale by the *true* head dim (matches keys.shape[-1] ** 0.5 in the module).
    s = s * jnp.float32(1.0 / math.sqrt(d_out))

    # Mask out padded kv rows (only traced if padding was actually added).
    if seq_pad > seq_len:
        col = jax.lax.broadcasted_iota(jnp.int32, s.shape, 1)
        s = jnp.where(col < seq_len, s, -jnp.inf)

    # Numerically stable softmax over the last axis.
    m = jnp.max(s, axis=-1, keepdims=True)
    e = jnp.exp(s - m)
    denom = jnp.sum(e, axis=-1, keepdims=True)
    attn = e * pl.reciprocal(denom, approx=False)

    # context = attn @ v  -> lane-dense (tq, dp) store.
    o_ref[...] = jnp.dot(attn, v, preferred_element_type=jnp.float32).astype(o_ref.dtype)


def self_attention_v1(x, w_query, w_key, w_value):
    seq_len, d_in = x.shape
    d_out = w_query.shape[1]

    DP = 128                                   # lane-dense padded head dim
    tq = min(256, _round_up(seq_len, 8))       # query-tile rows (multiple of 8)
    seq_pad = _round_up(seq_len, tq)

    # Fuse + lane-pad weights in the wrapper: (d_in, 3*DP) = [Wq | Wk | Wv].
    def _pad_w(w):
        return jnp.pad(w, ((0, 0), (0, DP - d_out)))

    w_qkv = jnp.concatenate([_pad_w(w_query), _pad_w(w_key), _pad_w(w_value)], axis=1)

    x_p = x if seq_pad == seq_len else jnp.pad(x, ((0, seq_pad - seq_len), (0, 0)))
    x_p = x_p.astype(jnp.float32)
    w_qkv = w_qkv.astype(jnp.float32)

    kernel = functools.partial(
        attn_kernel, seq_len=seq_len, d_out=d_out, dp=DP, seq_pad=seq_pad
    )

    # Advisory cost hint for XLA scheduling around the custom call.
    flops = 2 * seq_pad * d_in * 3 * DP + 2 * 2 * seq_pad * seq_pad * DP
    cost = pl.CostEstimate(
        flops=flops,
        transcendentals=seq_pad * seq_pad,
        bytes_accessed=4 * (2 * seq_pad * d_in + d_in * 3 * DP + seq_pad * DP),
    )

    out_p = pl.pallas_call(
        kernel,
        out_shape=jax.ShapeDtypeStruct((seq_pad, DP), jnp.float32),
        grid=(seq_pad // tq,),
        in_specs=[
            pl.BlockSpec((tq, d_in), lambda i: (i, 0)),        # query-tile rows of x
            pl.BlockSpec((seq_pad, d_in), lambda i: (0, 0)),   # full x for K/V (pinned)
            pl.BlockSpec((d_in, 3 * DP), lambda i: (0, 0)),    # fused padded weights (pinned)
        ],
        out_specs=pl.BlockSpec((tq, DP), lambda i: (i, 0)),
        compiler_params=pltpu.CompilerParams(
            dimension_semantics=("parallel",),                 # megacore-shardable q tiles
            vmem_limit_bytes=32 * 1024 * 1024,                 # safe on v5e/v6e/v7x
        ),
        cost_estimate=cost,
    )(x_p, x_p, w_qkv)

    # Drop sequence / lane padding.
    return out_p[:seq_len, :d_out]


def reference(x, wq, wk, wv):
    q = x @ wq
    k = x @ wk
    v = x @ wv
    s = (q @ k.T) / jnp.sqrt(jnp.float32(k.shape[-1]))
    w = jax.nn.softmax(s, axis=-1)
    return w @ v


if __name__ == "__main__":
    key = jax.random.PRNGKey(0)
    k_x, k_q, k_k, k_v = jax.random.split(key, 4)

    seq_len, d_in, d_out = 8, 32, 32   # small shapes consistent with the module

    x = jax.random.normal(k_x, (seq_len, d_in), dtype=jnp.float32)
    # torch.rand -> uniform [0, 1)
    w_query = jax.random.uniform(k_q, (d_in, d_out), dtype=jnp.float32)
    w_key = jax.random.uniform(k_k, (d_in, d_out), dtype=jnp.float32)
    w_value = jax.random.uniform(k_v, (d_in, d_out), dtype=jnp.float32)

    out = self_attention_v1(x, w_query, w_key, w_value)
    out = jax.block_until_ready(out)

    ref = reference(x, w_query, w_key, w_value)
    assert out.shape == (seq_len, d_out)
    assert jnp.allclose(out, ref, atol=1e-4, rtol=1e-4)

    print("KERNEL_OK")
</pallas_src>

<mosaic_0001>
module attributes {stable_mosaic.version = 11 : i64} {
  func.func @attn_kernel(%arg0: i32, %arg1: memref<8x32xf32, #tpu.memory_space<vmem>>, %arg2: memref<8x32xf32, #tpu.memory_space<vmem>>, %arg3: memref<32x384xf32, #tpu.memory_space<vmem>>, %arg4: memref<8x128xf32, #tpu.memory_space<vmem>>) attributes {dimension_semantics = [#tpu.dimension_semantics<parallel>], iteration_bounds = array<i64: 1>, scalar_prefetch = 0 : i64, scratch_operands = 0 : i64, tpu.core_type = #tpu.core_type<tc>, window_params = [{transform_indices = @transform_0, window_bounds = array<i64: 8, 32>}, {pipeline_mode = #tpu.pipeline_mode<synchronous>, transform_indices = @transform_1, window_bounds = array<i64: 8, 32>}, {pipeline_mode = #tpu.pipeline_mode<synchronous>, transform_indices = @transform_2, window_bounds = array<i64: 32, 384>}, {transform_indices = @transform_3, window_bounds = array<i64: 8, 128>}]} {
    %c0 = arith.constant 0 : index
    %c0_0 = arith.constant 0 : index
    %0 = vector.load %arg1[%c0, %c0_0] : memref<8x32xf32, #tpu.memory_space<vmem>>, vector<8x32xf32>
    %c0_1 = arith.constant 0 : index
    %c0_2 = arith.constant 0 : index
    %1 = vector.load %arg2[%c0_1, %c0_2] : memref<8x32xf32, #tpu.memory_space<vmem>>, vector<8x32xf32>
    %c0_3 = arith.constant 0 : index
    %c0_4 = arith.constant 0 : index
    %2 = vector.load %arg3[%c0_3, %c0_4] : memref<32x384xf32, #tpu.memory_space<vmem>>, vector<32x128xf32>
    %cst = arith.constant dense<0.000000e+00> : vector<8x128xf32>
    %3 = tpu.matmul %0, %2, %cst {dimension_numbers = #tpu.dot_dimension_numbers<[1], [0], [0], [1], [0, 0, 1, 1], [], []>} : vector<8x32xf32>, vector<32x128xf32>, vector<8x128xf32> -> vector<8x128xf32>
    %c0_5 = arith.constant 0 : index
    %c128 = arith.constant 128 : index
    %4 = vector.load %arg3[%c0_5, %c128] : memref<32x384xf32, #tpu.memory_space<vmem>>, vector<32x256xf32>
    %cst_6 = arith.constant dense<0.000000e+00> : vector<8x256xf32>
    %5 = tpu.matmul %1, %4, %cst_6 {dimension_numbers = #tpu.dot_dimension_numbers<[1], [0], [0], [1], [0, 0, 1, 1], [], []>} : vector<8x32xf32>, vector<32x256xf32>, vector<8x256xf32> -> vector<8x256xf32>
    %6 = vector.extract_strided_slice %5 {offsets = [0, 0], sizes = [8, 128], strides = [1, 1]} : vector<8x256xf32> to vector<8x128xf32>
    %7 = vector.extract_strided_slice %5 {offsets = [0, 128], sizes = [8, 128], strides = [1, 1]} : vector<8x256xf32> to vector<8x128xf32>
    %cst_7 = arith.constant dense<0.000000e+00> : vector<8x8xf32>
    %8 = tpu.matmul %3, %6, %cst_7 {dimension_numbers = #tpu.dot_dimension_numbers<[1], [1], [0], [0], [0, 0, 1, 0], [], []>} : vector<8x128xf32>, vector<8x128xf32>, vector<8x8xf32> -> vector<8x8xf32>
    %cst_8 = arith.constant 0.176776692 : f32
    %9 = vector.broadcast %cst_8 : f32 to vector<8x8xf32>
    %10 = arith.mulf %8, %9 : vector<8x8xf32>
    %cst_9 = arith.constant dense<0xFF800000> : vector<8xf32>
    %11 = vector.multi_reduction <maximumf>, %10, %cst_9 [1] : vector<8x8xf32> to vector<8xf32>
    %12 = vector.shape_cast %11 : vector<8xf32> to vector<8x1xf32>
    %13 = vector.broadcast %12 : vector<8x1xf32> to vector<8x8xf32>
    %14 = arith.subf %10, %13 : vector<8x8xf32>
    %15 = math.exp %14 : vector<8x8xf32>
    %cst_10 = arith.constant dense<0.000000e+00> : vector<8xf32>
    %16 = vector.multi_reduction <add>, %15, %cst_10 [1] : vector<8x8xf32> to vector<8xf32>
    %17 = vector.shape_cast %16 : vector<8xf32> to vector<8x1xf32>
    %18 = tpu.reciprocal %17 : vector<8x1xf32> -> vector<8x1xf32>
    %19 = vector.broadcast %18 : vector<8x1xf32> to vector<8x8xf32>
    %20 = arith.mulf %15, %19 : vector<8x8xf32>
    %cst_11 = arith.constant dense<0.000000e+00> : vector<8x128xf32>
    %21 = tpu.matmul %20, %7, %cst_11 {dimension_numbers = #tpu.dot_dimension_numbers<[1], [0], [0], [1], [0, 0, 1, 1], [], []>} : vector<8x8xf32>, vector<8x128xf32>, vector<8x128xf32> -> vector<8x128xf32>
    %c0_12 = arith.constant 0 : index
    %c0_13 = arith.constant 0 : index
    %22 = vector.load %arg4[%c0_12, %c0_13] : memref<8x128xf32, #tpu.memory_space<vmem>>, vector<8x128xf32>
    tpu.vector_store %arg4[%c0_12, %c0_13], %21 {strides = array<i32>} : memref<8x128xf32, #tpu.memory_space<vmem>>, vector<8x128xf32>,
    return
  }
  func.func @transform_0(%arg0: i32) -> (i32, i32) {
    %c0_i32 = arith.constant 0 : i32
    %c0_i32_0 = arith.constant 0 : i32
    return %arg0, %c0_i32 : i32, i32
  }
  func.func @transform_1(%arg0: i32) -> (i32, i32) {
    %c0_i32 = arith.constant 0 : i32
    %c0_i32_0 = arith.constant 0 : i32
    %c0_i32_1 = arith.constant 0 : i32
    return %c0_i32, %c0_i32_0 : i32, i32
  }
  func.func @transform_2(%arg0: i32) -> (i32, i32) {
    %c0_i32 = arith.constant 0 : i32
    %c0_i32_0 = arith.constant 0 : i32
    %c0_i32_1 = arith.constant 0 : i32
    return %c0_i32, %c0_i32_0 : i32, i32
  }
  func.func @transform_3(%arg0: i32) -> (i32, i32) {
    %c0_i32 = arith.constant 0 : i32
    %c0_i32_0 = arith.constant 0 : i32
    return %arg0, %c0_i32 : i32, i32
  }
}

</mosaic_0001>

<llo_original>
// kernel: tpu_custom_call.1
$region0: #{tpu_custom_call.1}
  #allocation0 [shape = 'u32[]', space=smem, size = 0x4, offset = 0x4, fixed_abs, tag = 'smem constant byte address 0x4 - core index']
  #allocation1 [shape = 'u32[144,128]{1,0:T(1,128)}', space=vmem, size = 0x12000, scoped, tag = 'internal scratch']
  %s0 = inlined_call_operand.hbm [shape: f32[8,32], index: 0, kind: input, shape index: {}]
  %s1 = inlined_call_operand.hbm [shape: f32[8,32], index: 1, kind: input, shape index: {}]
  %s2 = inlined_call_operand.hbm [shape: f32[32,384], index: 2, kind: input, shape index: {}]
  %s3 = inlined_call_operand.hbm [shape: f32[8,128], index: 3, kind: output, shape index: {}]
  %s4 = sld [smem:[#allocation0]]
  $region34: #{tpu_custom_call.1} parent=0
    _
  %s6 = ssub.s32 1, %s4
  %s7 = scalar_select 0, %s6, %s4
  $region1: #{tpu_custom_call.1} parent=0
    #allocation2 [shape = 'u8[4096]{0}', space=vmem, size = 0x1000, scoped, tag = 'input window, operand 0, single buffered']
    #allocation3 [shape = 's32[1]{0}', space=sflag, size = 0x4, scoped, tag = 'scoped memory for tpu_custom_call.1']
    #allocation4 [shape = 's32[1]{0}', space=sflag, size = 0x4, scoped, tag = 'scoped memory for tpu_custom_call.1']
    #allocation5 [shape = 'u8[4096]{0}', space=vmem, size = 0x1000, scoped, tag = 'input window, operand 1, single buffered']
    #allocation6 [shape = 's32[1]{0}', space=sflag, size = 0x4, scoped, tag = 'scoped memory for tpu_custom_call.1']
    #allocation7 [shape = 'u8[49152]{0}', space=vmem, size = 0xc000, scoped, tag = 'input window, operand 2, single buffered']
    #allocation8 [shape = 'u8[4096]{0}', space=vmem, size = 0x1000, scoped, tag = 'output window, operand 0, single buffered']
    %8 = vsyncpa [#allocation3], 0
    %9 = vsyncpa [#allocation6], 0
    %10 = vsyncpa [#allocation4], 0
    // Predicated region
    $region2: #{tpu_custom_call.1} parent=1 // pred_check
      _
    $region3: #{tpu_custom_call.1} parent=1 // pred_check_branch
      %12 = sbr.rel (0) target = $region5
    $region4: #{tpu_custom_call.1} parent=1 // pred_region
      %s14 = ssub.s32 128, 128
      %15 = vsyncadd [#allocation3], %s14
      %s17 = sshll.u32 [#allocation2], 4
      %s18 = int_to_ptr.vmem [resolvable:$true] %s17
      %20 = dma.hbm_to_vmem [thread:$0]  %s0, 128, %s18, [#allocation3]
    $region5: #{tpu_custom_call.1} parent=1 // pred_fallthru
      _
    // Predicated region
    $region6: #{tpu_custom_call.1} parent=1 // pred_check
      _
    $region7: #{tpu_custom_call.1} parent=1 // pred_check_branch
      %22 = sbr.rel (0) target = $region9
    $region8: #{tpu_custom_call.1} parent=1 // pred_region
      %s24 = ssub.s32 128, 128
      %25 = vsyncadd [#allocation6], %s24
      %s27 = sshll.u32 [#allocation5], 4
      %s28 = int_to_ptr.vmem [resolvable:$true] %s27
      %30 = dma.hbm_to_vmem [thread:$0]  %s1, 128, %s28, [#allocation6]
    $region9: #{tpu_custom_call.1} parent=1 // pred_fallthru
      _
    // Predicated region
    $region10: #{tpu_custom_call.1} parent=1 // pred_check
      _
    $region11: #{tpu_custom_call.1} parent=1 // pred_check_branch
      %32 = sbr.rel (0) target = $region13
    $region12: #{tpu_custom_call.1} parent=1 // pred_region
      %s34 = ssub.s32 1536, 1536
      %35 = vsyncadd [#allocation6], %s34
      %s36 = sshll.u32 [#allocation7], 4
      %s37 = int_to_ptr.vmem [resolvable:$true] %s36
      %42 = dma.hbm_to_vmem [thread:$0]  %s2, 1536, %s37, [#allocation6], 384, 384, 24
    $region13: #{tpu_custom_call.1} parent=1 // pred_fallthru
      _
    // Predicated region
    $region14: #{tpu_custom_call.1} parent=1 // pred_check
      _
    $region15: #{tpu_custom_call.1} parent=1 // pred_check_branch
      %44 = sbr.rel (0) target = $region17
    $region16: #{tpu_custom_call.1} parent=1 // pred_region
      %45 = dma.done [#allocation3], 128
    $region17: #{tpu_custom_call.1} parent=1 // pred_fallthru
      _
    // Predicated region
    $region18: #{tpu_custom_call.1} parent=1 // pred_check
      _
    $region19: #{tpu_custom_call.1} parent=1 // pred_check_branch
      %47 = sbr.rel (0) target = $region21
    $region20: #{tpu_custom_call.1} parent=1 // pred_region
      %48 = dma.done [#allocation6], 128
    $region21: #{tpu_custom_call.1} parent=1 // pred_fallthru
      _
    // Predicated region
    $region22: #{tpu_custom_call.1} parent=1 // pred_check
      _
    $region23: #{tpu_custom_call.1} parent=1 // pred_check_branch
      %50 = sbr.rel (0) target = $region25
    $region24: #{tpu_custom_call.1} parent=1 // pred_region
      %51 = dma.done [#allocation6], 1536
    $region25: #{tpu_custom_call.1} parent=1 // pred_fallthru
      _
    %v52 = vld [vmem:[#allocation2] sm:$0xff]
    %v53 = vld [vmem:[#allocation5] sm:$0xff]
    %v54 = vld [vmem:[#allocation7] sm:$0xff]
    %v55 = vld [vmem:[#allocation7 + $0x18] sm:$0xff]
    %v56 = vld [vmem:[#allocation7 + $0x30] sm:$0xff]
    %v57 = vld [vmem:[#allocation7 + $0x48] sm:$0xff]
    %vm58 = vcmask 261120
    %v60 = vsel %vm58, %v52, 0
    %62 = vmatprep.subr.mxu0 0.0
    %63 = vmatpush1.msra.mxu0 %v54
    %64 = vmatprep.subr.mxu0 0.0
    %65 = vmatpush1.msra.mxu0 %v55
    %66 = vmatprep.subr.mxu0 0.0
    %67 = vmatpush1.msra.mxu0 %v56
    %68 = vmatprep.subr.mxu0 0.0
    %69 = vmatpush1.msra.mxu0 %v57
    %70 = vmatprep.subr.mxu0 0.0
    %71 = vmatpush1.msra.mxu0 0.0
    %72 = vmatprep.subr.mxu0 0.0
    %73 = vmatpush1.msra.mxu0 0.0
    %74 = vmatprep.subr.mxu0 0.0
    %75 = vmatpush1.msra.mxu0 0.0
    %76 = vmatprep.subr.mxu0 0.0
    %77 = vmatpush1.msra.mxu0 0.0
    %78 = vmatprep.subr.mxu0 0.0
    %79 = vmatpush1.msra.mxu0 0.0
    %80 = vmatprep.subr.mxu0 0.0
    %81 = vmatpush1.msra.mxu0 0.0
    %82 = vmatprep.subr.mxu0 0.0
    %83 = vmatpush1.msra.mxu0 0.0
    %84 = vmatprep.subr.mxu0 0.0
    %85 = vmatpush1.msra.mxu0 0.0
    %86 = vmatprep.subr.mxu0 0.0
    %87 = vmatpush1.msra.mxu0 0.0
    %88 = vmatprep.subr.mxu0 0.0
    %89 = vmatpush1.msra.mxu0 0.0
    %90 = vmatprep.subr.mxu0 0.0
    %91 = vmatpush1.msra.mxu0 0.0
    %92 = vmatprep.subr.mxu0 0.0
    %93 = vmatpush1.msra.mxu0 0.0
    %94 = vmatprep.subr.mxu0 0.0
    %95 = vmatpush1.msra.mxu0 0.0
    %96 = vmatprep.subr.mxu0 0.0
    %97 = vmatpush1.msra.mxu0 0.0
    %98 = vmatprep.subr.mxu0 0.0
    %99 = vmatpush1.msra.mxu0 0.0
    %100 = vmatprep.subr.mxu0 0.0
    %101 = vmatpush1.msra.mxu0 0.0
    %102 = vmatprep.subr.mxu0 0.0
    %103 = vmatpush1.msra.mxu0 0.0
    %104 = vmatprep.subr.mxu0 0.0
    %105 = vmatpush1.msra.mxu0 0.0
    %106 = vmatprep.subr.mxu0 0.0
    %107 = vmatpush1.msra.mxu0 0.0
    %108 = vmatprep.subr.mxu0 0.0
    %109 = vmatpush1.msra.mxu0 0.0
    %110 = vmatprep.subr.mxu0 0.0
    %111 = vmatpush1.msra.mxu0 0.0
    %112 = vmatprep.subr.mxu0 0.0
    %113 = vmatpush1.msra.mxu0 0.0
    %114 = vmatprep.subr.mxu0 0.0
    %115 = vmatpush1.msra.mxu0 0.0
    %116 = vmatprep.subr.mxu0 0.0
    %117 = vmatpush1.msra.mxu0 0.0
    %118 = vmatprep.subr.mxu0 0.0
    %119 = vmatpush1.msra.mxu0 0.0
    %120 = vmatprep.subr.mxu0 0.0
    %121 = vmatpush1.msra.mxu0 0.0
    %122 = vmatprep.subr.mxu0 0.0
    %123 = vmatpush1.msra.mxu0 0.0
    %124 = vmatprep.subr.mxu0 0.0
    %125 = vmatpush1.msra.mxu0 0.0
    %126 = vmatprep.mubr.f32.mxu0 0.0
    %127 = vmatmul.mubr.f32.gmra.mrb[0].mxu0 %v60
    %v128 = vpop.f32.mrb[0].mxu0
    %v129 = vadd.f32 0.0, %v128
    %v130 = vpop.f32.mrb[0].mxu0
    %131 = vdwg.mxu0
    %v132 = vld [vmem:[#allocation7 + $0x8] sm:$0xff]
    %v133 = vld [vmem:[#allocation7 + $0x10] sm:$0xff]
    %v134 = vld [vmem:[#allocation7 + $0x20] sm:$0xff]
    %v135 = vld [vmem:[#allocation7 + $0x28] sm:$0xff]
    %v136 = vld [vmem:[#allocation7 + $0x38] sm:$0xff]
    %v137 = vld [vmem:[#allocation7 + $0x40] sm:$0xff]
    %v138 = vld [vmem:[#allocation7 + $0x50] sm:$0xff]
    %v139 = vld [vmem:[#allocation7 + $0x58] sm:$0xff]
    %v141 = vsel %vm58, %v53, 0
    %143 = vmatprep.subr.mxu0 %v133
    %144 = vmatpush1.msra.mxu0 %v132
    %145 = vmatprep.subr.mxu0 %v135
    %146 = vmatpush1.msra.mxu0 %v134
    %147 = vmatprep.subr.mxu0 %v137
    %148 = vmatpush1.msra.mxu0 %v136
    %149 = vmatprep.subr.mxu0 %v139
    %150 = vmatpush1.msra.mxu0 %v138
    %151 = vmatprep.subr.mxu0 0.0
    %152 = vmatpush1.msra.mxu0 0.0
    %153 = vmatprep.subr.mxu0 0.0
    %154 = vmatpush1.msra.mxu0 0.0
    %155 = vmatprep.subr.mxu0 0.0
    %156 = vmatpush1.msra.mxu0 0.0
    %157 = vmatprep.subr.mxu0 0.0
    %158 = vmatpush1.msra.mxu0 0.0
    %159 = vmatprep.subr.mxu0 0.0
    %160 = vmatpush1.msra.mxu0 0.0
    %161 = vmatprep.subr.mxu0 0.0
    %162 = vmatpush1.msra.mxu0 0.0
    %163 = vmatprep.subr.mxu0 0.0
    %164 = vmatpush1.msra.mxu0 0.0
    %165 = vmatprep.subr.mxu0 0.0
    %166 = vmatpush1.msra.mxu0 0.0
    %167 = vmatprep.subr.mxu0 0.0
    %168 = vmatpush1.msra.mxu0 0.0
    %169 = vmatprep.subr.mxu0 0.0
    %170 = vmatpush1.msra.mxu0 0.0
    %171 = vmatprep.subr.mxu0 0.0
    %172 = vmatpush1.msra.mxu0 0.0
    %173 = vmatprep.subr.mxu0 0.0
    %174 = vmatpush1.msra.mxu0 0.0
    %175 = vmatprep.subr.mxu0 0.0
    %176 = vmatpush1.msra.mxu0 0.0
    %177 = vmatprep.subr.mxu0 0.0
    %178 = vmatpush1.msra.mxu0 0.0
    %179 = vmatprep.subr.mxu0 0.0
    %180 = vmatpush1.msra.mxu0 0.0
    %181 = vmatprep.subr.mxu0 0.0
    %182 = vmatpush1.msra.mxu0 0.0
    %183 = vmatprep.subr.mxu0 0.0
    %184 = vmatpush1.msra.mxu0 0.0
    %185 = vmatprep.subr.mxu0 0.0
    %186 = vmatpush1.msra.mxu0 0.0
    %187 = vmatprep.subr.mxu0 0.0
    %188 = vmatpush1.msra.mxu0 0.0
    %189 = vmatprep.subr.mxu0 0.0
    %190 = vmatpush1.msra.mxu0 0.0
    %191 = vmatprep.subr.mxu0 0.0
    %192 = vmatpush1.msra.mxu0 0.0
    %193 = vmatprep.subr.mxu0 0.0
    %194 = vmatpush1.msra.mxu0 0.0
    %195 = vmatprep.subr.mxu0 0.0
    %196 = vmatpush1.msra.mxu0 0.0
    %197 = vmatprep.subr.mxu0 0.0
    %198 = vmatpush1.msra.mxu0 0.0
    %199 = vmatprep.subr.mxu0 0.0
    %200 = vmatpush1.msra.mxu0 0.0
    %201 = vmatprep.subr.mxu0 0.0
    %202 = vmatpush1.msra.mxu0 0.0
    %203 = vmatprep.subr.mxu0 0.0
    %204 = vmatpush1.msra.mxu0 0.0
    %205 = vmatprep.subr.mxu0 0.0
    %206 = vmatpush1.msra.mxu0 0.0
    %207 = vmatprep.mubr.f32.mxu0 0.0
    %208 = vmatmul.mubr.f32.gmra.mrb[0].mxu0 %v141
    %v209 = vpop.f32.mrb[0].mxu0
    %v210 = vadd.f32 0.0, %v209
    %v211 = vpop.f32.mrb[0].mxu0
    %v212 = vadd.f32 0.0, %v211
    %213 = vdwg.mxu0
    %214 = vmatprep.subr.mxu0 0.0
    %215 = vmatpush1.xpose.msra.mxu0 %v210
    %216 = vmatprep.subr.mxu0 0.0
    %217 = vmatpush1.xpose.msra.mxu0 0.0
    %218 = vmatprep.subr.mxu0 0.0
    %219 = vmatpush1.xpose.msra.mxu0 0.0
    %220 = vmatprep.subr.mxu0 0.0
    %221 = vmatpush1.xpose.msra.mxu0 0.0
    %222 = vmatprep.subr.mxu0 0.0
    %223 = vmatpush1.xpose.msra.mxu0 0.0
    %224 = vmatprep.subr.mxu0 0.0
    %225 = vmatpush1.xpose.msra.mxu0 0.0
    %226 = vmatprep.subr.mxu0 0.0
    %227 = vmatpush1.xpose.msra.mxu0 0.0
    %228 = vmatprep.subr.mxu0 0.0
    %229 = vmatpush1.xpose.msra.mxu0 0.0
    %230 = vmatprep.subr.mxu0 0.0
    %231 = vmatpush1.xpose.msra.mxu0 0.0
    %232 = vmatprep.subr.mxu0 0.0
    %233 = vmatpush1.xpose.msra.mxu0 0.0
    %234 = vmatprep.subr.mxu0 0.0
    %235 = vmatpush1.xpose.msra.mxu0 0.0
    %236 = vmatprep.subr.mxu0 0.0
    %237 = vmatpush1.xpose.msra.mxu0 0.0
    %238 = vmatprep.subr.mxu0 0.0
    %239 = vmatpush1.xpose.msra.mxu0 0.0
    %240 = vmatprep.subr.mxu0 0.0
    %241 = vmatpush1.xpose.msra.mxu0 0.0
    %242 = vmatprep.subr.mxu0 0.0
    %243 = vmatpush1.xpose.msra.mxu0 0.0
    %244 = vmatprep.subr.mxu0 0.0
    %245 = vmatpush1.xpose.msra.mxu0 0.0
    %246 = vmatprep.subr.mxu0 0.0
    %247 = vmatpush1.xpose.msra.mxu0 0.0
    %248 = vmatprep.subr.mxu0 0.0
    %249 = vmatpush1.xpose.msra.mxu0 0.0
    %250 = vmatprep.subr.mxu0 0.0
    %251 = vmatpush1.xpose.msra.mxu0 0.0
    %252 = vmatprep.subr.mxu0 0.0
    %253 = vmatpush1.xpose.msra.mxu0 0.0
    %254 = vmatprep.subr.mxu0 0.0
    %255 = vmatpush1.xpose.msra.mxu0 0.0
    %256 = vmatprep.subr.mxu0 0.0
    %257 = vmatpush1.xpose.msra.mxu0 0.0
    %258 = vmatprep.subr.mxu0 0.0
    %259 = vmatpush1.xpose.msra.mxu0 0.0
    %260 = vmatprep.subr.mxu0 0.0
    %261 = vmatpush1.xpose.msra.mxu0 0.0
    %262 = vmatprep.subr.mxu0 0.0
    %263 = vmatpush1.xpose.msra.mxu0 0.0
    %264 = vmatprep.subr.mxu0 0.0
    %265 = vmatpush1.xpose.msra.mxu0 0.0
    %266 = vmatprep.subr.mxu0 0.0
    %267 = vmatpush1.xpose.msra.mxu0 0.0
    %268 = vmatprep.subr.mxu0 0.0
    %269 = vmatpush1.xpose.msra.mxu0 0.0
    %270 = vmatprep.subr.mxu0 0.0
    %271 = vmatpush1.xpose.msra.mxu0 0.0
    %272 = vmatprep.subr.mxu0 0.0
    %273 = vmatpush1.xpose.msra.mxu0 0.0
    %274 = vmatprep.subr.mxu0 0.0
    %275 = vmatpush1.xpose.msra.mxu0 0.0
    %276 = vmatprep.subr.mxu0 0.0
    %277 = vmatpush1.xpose.msra.mxu0 0.0
    %278 = vmatprep.mubr.f32.mxu0 0.0
    %279 = vmatmul.mubr.f32.gmra.mrb[0].mxu0 %v129
    %v280 = vpop.f32.mrb[0].mxu0
    %v281 = vadd.f32 0.0, %v280
    %v282 = vpop.f32.mrb[0].mxu0
    %283 = vdwg.mxu0
    %v284 = vmul.f32 %v281, 0.17677669
    %vm285 = vcmask 64512
    %v286 = vsel %vm285, %v284, -inf
    %287 = vmax.xlane.f32.xlu0 %v286
    %v288 = vpop.xlane.xlu0 %287
    %v289 = vsub.f32 %v284, %v288
    %v290 = vmul.f32 %v289, 1.442695
    %v291 = vpow.pop %v290
    %v292 = vsel %vm285, %v291, 0.0
    %293 = vadd.xlane.f32.xlu0 %v292
    %v294 = vpop.xlane.xlu0 %293
    %v295 = vrcp.pop %v294
    %v296 = vmul.f32 %v291, %v295
    %v298 = vsel %vm285, %v296, 0
    %300 = vmatprep.subr.mxu0 0.0
    %301 = vmatpush1.msra.mxu0 %v212
    %302 = vmatprep.subr.mxu0 0.0
    %303 = vmatpush1.msra.mxu0 0.0
    %304 = vmatprep.subr.mxu0 0.0
    %305 = vmatpush1.msra.mxu0 0.0
    %306 = vmatprep.subr.mxu0 0.0
    %307 = vmatpush1.msra.mxu0 0.0
    %308 = vmatprep.subr.mxu0 0.0
    %309 = vmatpush1.msra.mxu0 0.0
    %310 = vmatprep.subr.mxu0 0.0
    %311 = vmatpush1.msra.mxu0 0.0
    %312 = vmatprep.subr.mxu0 0.0
    %313 = vmatpush1.msra.mxu0 0.0
    %314 = vmatprep.subr.mxu0 0.0
    %315 = vmatpush1.msra.mxu0 0.0
    %316 = vmatprep.subr.mxu0 0.0
    %317 = vmatpush1.msra.mxu0 0.0
    %318 = vmatprep.subr.mxu0 0.0
    %319 = vmatpush1.msra.mxu0 0.0
    %320 = vmatprep.subr.mxu0 0.0
    %321 = vmatpush1.msra.mxu0 0.0
    %322 = vmatprep.subr.mxu0 0.0
    %323 = vmatpush1.msra.mxu0 0.0
    %324 = vmatprep.subr.mxu0 0.0
    %325 = vmatpush1.msra.mxu0 0.0
    %326 = vmatprep.subr.mxu0 0.0
    %327 = vmatpush1.msra.mxu0 0.0
    %328 = vmatprep.subr.mxu0 0.0
    %329 = vmatpush1.msra.mxu0 0.0
    %330 = vmatprep.subr.mxu0 0.0
    %331 = vmatpush1.msra.mxu0 0.0
    %332 = vmatprep.subr.mxu0 0.0
    %333 = vmatpush1.msra.mxu0 0.0
    %334 = vmatprep.subr.mxu0 0.0
    %335 = vmatpush1.msra.mxu0 0.0
    %336 = vmatprep.subr.mxu0 0.0
    %337 = vmatpush1.msra.mxu0 0.0
    %338 = vmatprep.subr.mxu0 0.0
    %339 = vmatpush1.msra.mxu0 0.0
    %340 = vmatprep.subr.mxu0 0.0
    %341 = vmatpush1.msra.mxu0 0.0
    %342 = vmatprep.subr.mxu0 0.0
    %343 = vmatpush1.msra.mxu0 0.0
    %344 = vmatprep.subr.mxu0 0.0
    %345 = vmatpush1.msra.mxu0 0.0
    %346 = vmatprep.subr.mxu0 0.0
    %347 = vmatpush1.msra.mxu0 0.0
    %348 = vmatprep.subr.mxu0 0.0
    %349 = vmatpush1.msra.mxu0 0.0
    %350 = vmatprep.subr.mxu0 0.0
    %351 = vmatpush1.msra.mxu0 0.0
    %352 = vmatprep.subr.mxu0 0.0
    %353 = vmatpush1.msra.mxu0 0.0
    %354 = vmatprep.subr.mxu0 0.0
    %355 = vmatpush1.msra.mxu0 0.0
    %356 = vmatprep.subr.mxu0 0.0
    %357 = vmatpush1.msra.mxu0 0.0
    %358 = vmatprep.subr.mxu0 0.0
    %359 = vmatpush1.msra.mxu0 0.0
    %360 = vmatprep.subr.mxu0 0.0
    %361 = vmatpush1.msra.mxu0 0.0
    %362 = vmatprep.subr.mxu0 0.0
    %363 = vmatpush1.msra.mxu0 0.0
    %364 = vmatprep.mubr.f32.mxu0 0.0
    %365 = vmatmul.mubr.f32.gmra.mrb[0].mxu0 %v298
    %v366 = vpop.f32.mrb[0].mxu0
    %v367 = vadd.f32 0.0, %v366
    %v368 = vpop.f32.mrb[0].mxu0
    %369 = vdwg.mxu0
    %370 = vst [vmem:[#allocation8] sm:$0xff] %v367
    // Predicated region
    $region26: #{tpu_custom_call.1} parent=1 // pred_check
      _
    $region27: #{tpu_custom_call.1} parent=1 // pred_check_branch
      %372 = sbr.rel (0) target = $region29
    $region28: #{tpu_custom_call.1} parent=1 // pred_region
      %s374 = ssub.s32 128, 128
      %375 = vsyncadd [#allocation4], %s374
      %s377 = sshll.u32 [#allocation8], 4
      %s378 = int_to_ptr.vmem [resolvable:$true] %s377
      %380 = dma.vmem_to_hbm [thread:$0]  %s378, 128, %s3, [#allocation4]
    $region29: #{tpu_custom_call.1} parent=1 // pred_fallthru
      _
    // Predicated region
    $region30: #{tpu_custom_call.1} parent=1 // pred_check
      _
    $region31: #{tpu_custom_call.1} parent=1 // pred_check_branch
      %382 = sbr.rel (0) target = $region33
    $region32: #{tpu_custom_call.1} parent=1 // pred_region
      %383 = dma.done [#allocation4], 128
    $region33: #{tpu_custom_call.1} parent=1 // pred_fallthru
      _
    %384 = vsyncpa [#allocation3], 1
    %385 = vsyncpa [#allocation6], 1
    %386 = vsyncpa [#allocation4], 1

</llo_original>
